<compile_context>
chip_gen: v5e
topology: v5e:2x2
jax: 0.10.0
libtpu: 0.0.40
codegen_flags: <defaults>
</compile_context>

<pallas_src>
import jax
import jax.numpy as jnp
from jax.experimental import pallas as pl
from jax.experimental.pallas import tpu as pltpu


def _round_up(x, m):
    return (x + m - 1) // m * m


def image_classification_net(img, w_conv, b_conv, w_fc, b_fc):
    """
    img:    (B, C_in, H, W)       float32 (NCHW, PyTorch convention)
    w_conv: (C_hid, C_in, KH, KW) float32 (OIHW, PyTorch conv weight), odd KH/KW
    b_conv: (C_hid,)              float32
    w_fc:   (NC, C_hid)           float32 (PyTorch Linear weight)
    b_fc:   (NC,)                 float32
    returns logits: (B, NC) float32
    """
    B, C_in, H, W = img.shape
    C_hid, _, KH, KW = w_conv.shape
    NC = w_fc.shape[0]
    assert KH % 2 == 1 and KW % 2 == 1, "SAME conv expects odd kernel"
    ph, pw = KH // 2, KW // 2

    Wr = _round_up(W, 8)            # row stride multiple of 8 -> dy*Wr shifts sublane-aligned
    K = KW * C_in                   # dx taps folded into channels -> contraction depth per dy
    M = H * Wr                      # conv-output slab rows (cols >= W masked by pool vector)
    TM = min(128, M)                # in-kernel M-chunk (bounds live vregs to ~1 matmul tile)
    M_pad = _round_up(M, TM)
    nc = M_pad // TM
    M_in = max((H + 2 * ph) * Wr, M_pad + (KH - 1) * Wr)   # multiple of 8 (Wr % 8 == 0)
    C_hid_p = _round_up(C_hid, 128)  # lane-dense hidden width
    NC_p = _round_up(NC, 128)        # lane-dense class width

    # ---- host-side layout prep (dx taps folded into channels; ~KW x bytes, no full im2col)
    x = jnp.transpose(img, (0, 2, 3, 1)).astype(jnp.bfloat16)       # NHWC, bf16 for the MXU
    right = (Wr + KW - 1) - (W + pw)                                # cols c+dx stay in-bounds
    x = jnp.pad(x, ((0, 0), (ph, ph), (pw, right), (0, 0)))         # (B, H+2ph, Wr+KW-1, C_in)
    x_fold = jnp.concatenate([x[:, :, dx:dx + Wr, :] for dx in range(KW)], axis=-1)
    x_fold = x_fold.reshape(B, (H + 2 * ph) * Wr, K)
    x_fold = jnp.pad(x_fold, ((0, 0), (0, M_in - (H + 2 * ph) * Wr), (0, 0)))  # (B, M_in, K)

    # per-dy conv weights: w_fold[dy, dx*C_in + ci, c_out] = w_conv[c_out, ci, dy, dx]
    w_fold = jnp.transpose(w_conv, (2, 3, 1, 0)).reshape(KH, K, C_hid)
    w_fold = jnp.pad(w_fold, ((0, 0), (0, 0), (0, C_hid_p - C_hid))).astype(jnp.bfloat16)

    b_conv_p = jnp.pad(b_conv, (0, C_hid_p - C_hid)).reshape(1, C_hid_p).astype(jnp.float32)

    # pooling vector per M-chunk: 1/(H*W) on valid rows/cols, 0 on padded garbage rows/cols.
    m_idx = jnp.arange(M_pad, dtype=jnp.int32)
    valid = (m_idx < M) & ((m_idx % Wr) < W)
    pool_vec = jnp.where(valid, 1.0 / (H * W), 0.0).astype(jnp.float32).reshape(nc, 1, TM)

    w_fc_p = jnp.pad(w_fc.T.astype(jnp.float32),
                     ((0, C_hid_p - C_hid), (0, NC_p - NC)))         # (C_hid_p, NC_p)
    b_fc_p = jnp.pad(b_fc.astype(jnp.float32), (0, NC_p - NC)).reshape(1, NC_p)

    # ---- one fused kernel: implicit-GEMM conv + bias + ReLU + global-avg-pool + FC head
    def kernel(x_ref, w_ref, b_ref, pv_ref, wfc_ref, bfc_ref, o_ref):
        bias = b_ref[...]                                   # (1, C_hid_p) f32, hoisted

        def chunk(c, pooled):
            m0 = c * TM
            m0 = m0 if isinstance(m0, int) else pl.multiple_of(m0, TM)
            # 3x3 SAME conv as implicit GEMM: dx folded into K host-side; the KH dy taps
            # are aligned sublane shifts (Wr % 8 == 0) -> KH MXU matmuls with K = KW*C_in,
            # bf16 inputs, f32 accumulation. acc initialized from tap 0 (no zeros + add).
            acc = jnp.dot(x_ref[0, pl.ds(m0, TM), :], w_ref[0],
                          preferred_element_type=jnp.float32)
            for dy in range(1, KH):                         # static, unrolled (2 more taps)
                acc = acc + jnp.dot(x_ref[0, pl.ds(m0 + dy * Wr, TM), :], w_ref[dy],
                                    preferred_element_type=jnp.float32)
            h = jnp.maximum(acc + bias, 0.0)                # bias + ReLU, f32 on the VPU
            # partial global-average-pool on the MXU; 1/HW scale + garbage-row/col mask
            # folded into the pool vector (no XLU cross-sublane reduction).
            return pooled + jnp.dot(pv_ref[c], h, preferred_element_type=jnp.float32)

        pooled = jax.lax.fori_loop(0, nc, chunk,
                                   jnp.zeros((1, C_hid_p), jnp.float32), unroll=True)
        # fused FC head: (1, 128) x (128, 128) lane-dense matmul + bias -> unmasked store.
        o_ref[0] = (jnp.dot(pooled, wfc_ref[...],
                            preferred_element_type=jnp.float32) + bfc_ref[...])

    cost = pl.CostEstimate(
        flops=2 * B * (KH * K * M_pad * C_hid_p + M_pad * C_hid_p + C_hid_p * NC_p),
        transcendentals=0,
        bytes_accessed=(2 * B * M_in * K + 2 * KH * K * C_hid_p
                        + 4 * (C_hid_p + nc * TM + C_hid_p * NC_p + NC_p + B * NC_p)),
    )

    # TODO(synk): for real resnet/inception resolutions (224x224+), add an M-tile grid axis
    # ("arbitrary", placed after the "parallel" batch axis) with a pooled VMEM accumulator
    # and pl.when init/finalize so each double-buffered input tile stays inside v7x's
    # 64 MiB VMEM; single-buffer the grid-invariant operands there (pipeline_mode=
    # pl.Buffered(1)) and retune TM / vmem_limit_bytes per generation (bigger tiles on
    # v5e/v6e's 128 MiB VMEM).
    logits_p = pl.pallas_call(
        kernel,
        out_shape=jax.ShapeDtypeStruct((B, 1, NC_p), jnp.float32),
        grid_spec=pltpu.PrefetchScalarGridSpec(
            num_scalar_prefetch=0,
            grid=(B,),
            in_specs=[
                pl.BlockSpec((1, M_in, K), lambda b: (b, 0, 0)),
                pl.BlockSpec((KH, K, C_hid_p), lambda b: (0, 0, 0)),
                pl.BlockSpec((1, C_hid_p), lambda b: (0, 0)),
                pl.BlockSpec((nc, 1, TM), lambda b: (0, 0, 0)),
                pl.BlockSpec((C_hid_p, NC_p), lambda b: (0, 0)),
                pl.BlockSpec((1, NC_p), lambda b: (0, 0)),
            ],
            out_specs=pl.BlockSpec((1, 1, NC_p), lambda b: (b, 0, 0)),
        ),
        compiler_params=pltpu.CompilerParams(
            dimension_semantics=("parallel",),   # batch shards across v7x's 2 TensorCores
            vmem_limit_bytes=32 * 1024 * 1024,
        ),
        cost_estimate=cost,
    )(x_fold, w_fold, b_conv_p, pool_vec, w_fc_p, b_fc_p)

    return logits_p[:, 0, :NC]


def _reference(img, w_conv, b_conv, w_fc, b_fc):
    """Pure-JAX f32 reference matching the PyTorch composition of the stand-in backbone."""
    conv = jax.lax.conv_general_dilated(
        img, w_conv, window_strides=(1, 1), padding="SAME",
        dimension_numbers=("NCHW", "OIHW", "NCHW"))
    h = jax.nn.relu(conv + b_conv[None, :, None, None])
    pooled = h.mean(axis=(2, 3))                                    # (B, C_hid)
    return pooled @ w_fc.T + b_fc


if __name__ == "__main__":
    B, C_in, H, W = 2, 3, 16, 16
    C_hid, NUM_CLASSES = 32, 40

    key = jax.random.PRNGKey(0)
    k_img, k_wc, k_bc, k_wf, k_bf = jax.random.split(key, 5)

    img = jax.random.normal(k_img, (B, C_in, H, W), dtype=jnp.float32)
    w_conv = jax.random.normal(k_wc, (C_hid, C_in, 3, 3), dtype=jnp.float32) * 0.1
    b_conv = jax.random.normal(k_bc, (C_hid,), dtype=jnp.float32) * 0.1
    w_fc = jax.random.normal(k_wf, (NUM_CLASSES, C_hid), dtype=jnp.float32) * 0.1
    b_fc = jax.random.normal(k_bf, (NUM_CLASSES,), dtype=jnp.float32) * 0.1

    logits = image_classification_net(img, w_conv, b_conv, w_fc, b_fc)
    logits = jax.block_until_ready(logits)

    ref = _reference(img, w_conv, b_conv, w_fc, b_fc)
    assert logits.shape == (B, NUM_CLASSES)
    # bf16 conv inputs with f32 MXU accumulation -> tolerance loosened vs the pure-f32 path.
    assert jnp.allclose(logits, ref, rtol=2e-2, atol=2e-2), "mismatch vs reference"

    print("KERNEL_OK")
</pallas_src>

<mosaic_0001>
module attributes {stable_mosaic.version = 11 : i64} {
  func.func @kernel(%arg0: i32, %arg1: memref<1x288x9xbf16, #tpu.memory_space<vmem>>, %arg2: memref<3x9x128xbf16, #tpu.memory_space<vmem>>, %arg3: memref<1x128xf32, #tpu.memory_space<vmem>>, %arg4: memref<2x1x128xf32, #tpu.memory_space<vmem>>, %arg5: memref<128x128xf32, #tpu.memory_space<vmem>>, %arg6: memref<1x128xf32, #tpu.memory_space<vmem>>, %arg7: memref<1x1x128xf32, #tpu.memory_space<vmem>>) attributes {dimension_semantics = [#tpu.dimension_semantics<parallel>], iteration_bounds = array<i64: 2>, scalar_prefetch = 0 : i64, scratch_operands = 0 : i64, tpu.core_type = #tpu.core_type<tc>, window_params = [{transform_indices = @transform_0, window_bounds = array<i64: 1, 288, 9>}, {pipeline_mode = #tpu.pipeline_mode<synchronous>, transform_indices = @transform_1, window_bounds = array<i64: 3, 9, 128>}, {pipeline_mode = #tpu.pipeline_mode<synchronous>, transform_indices = @transform_2, window_bounds = array<i64: 1, 128>}, {pipeline_mode = #tpu.pipeline_mode<synchronous>, transform_indices = @transform_3, window_bounds = array<i64: 2, 1, 128>}, {pipeline_mode = #tpu.pipeline_mode<synchronous>, transform_indices = @transform_4, window_bounds = array<i64: 128, 128>}, {pipeline_mode = #tpu.pipeline_mode<synchronous>, transform_indices = @transform_5, window_bounds = array<i64: 1, 128>}, {transform_indices = @transform_6, window_bounds = array<i64: 1, 1, 128>}]} {
    %c0 = arith.constant 0 : index
    %c0_0 = arith.constant 0 : index
    %0 = vector.load %arg3[%c0, %c0_0] : memref<1x128xf32, #tpu.memory_space<vmem>>, vector<1x128xf32>
    %cst = arith.constant 0.000000e+00 : f32
    %1 = vector.broadcast %cst : f32 to vector<1x128xf32>
    %c0_i32 = arith.constant 0 : i32
    %c128_i32 = arith.constant 128 : i32
    %2 = arith.muli %c0_i32, %c128_i32 : i32
    %3 = tpu.assume_multiple %2, 128 : i32
    %c0_1 = arith.constant 0 : index
    %4 = arith.index_cast %3 : i32 to index
    %c0_2 = arith.constant 0 : index
    %5 = vector.load %arg1[%c0_1, %4, %c0_2] : memref<1x288x9xbf16, #tpu.memory_space<vmem>>, vector<1x128x9xbf16>
    %6 = vector.shape_cast %5 : vector<1x128x9xbf16> to vector<128x9xbf16>
    %c0_3 = arith.constant 0 : index
    %c0_4 = arith.constant 0 : index
    %c0_5 = arith.constant 0 : index
    %7 = vector.load %arg2[%c0_3, %c0_4, %c0_5] : memref<3x9x128xbf16, #tpu.memory_space<vmem>>, vector<1x9x128xbf16>
    %8 = vector.shape_cast %7 : vector<1x9x128xbf16> to vector<9x128xbf16>
    %cst_6 = arith.constant dense<0.000000e+00> : vector<128x128xf32>
    %9 = tpu.matmul %6, %8, %cst_6 {dimension_numbers = #tpu.dot_dimension_numbers<[1], [0], [0], [1], [0, 0, 1, 1], [], []>} : vector<128x9xbf16>, vector<9x128xbf16>, vector<128x128xf32> -> vector<128x128xf32>
    %c16_i32 = arith.constant 16 : i32
    %10 = arith.addi %3, %c16_i32 : i32
    %c0_7 = arith.constant 0 : index
    %11 = arith.index_cast %10 : i32 to index
    %c0_8 = arith.constant 0 : index
    %12 = vector.load %arg1[%c0_7, %11, %c0_8] : memref<1x288x9xbf16, #tpu.memory_space<vmem>>, vector<1x128x9xbf16>
    %13 = vector.shape_cast %12 : vector<1x128x9xbf16> to vector<128x9xbf16>
    %c1 = arith.constant 1 : index
    %c0_9 = arith.constant 0 : index
    %c0_10 = arith.constant 0 : index
    %14 = vector.load %arg2[%c1, %c0_9, %c0_10] : memref<3x9x128xbf16, #tpu.memory_space<vmem>>, vector<1x9x128xbf16>
    %15 = vector.shape_cast %14 : vector<1x9x128xbf16> to vector<9x128xbf16>
    %cst_11 = arith.constant dense<0.000000e+00> : vector<128x128xf32>
    %16 = tpu.matmul %13, %15, %cst_11 {dimension_numbers = #tpu.dot_dimension_numbers<[1], [0], [0], [1], [0, 0, 1, 1], [], []>} : vector<128x9xbf16>, vector<9x128xbf16>, vector<128x128xf32> -> vector<128x128xf32>
    %17 = arith.addf %9, %16 : vector<128x128xf32>
    %c32_i32 = arith.constant 32 : i32
    %18 = arith.addi %3, %c32_i32 : i32
    %c0_12 = arith.constant 0 : index
    %19 = arith.index_cast %18 : i32 to index
    %c0_13 = arith.constant 0 : index
    %20 = vector.load %arg1[%c0_12, %19, %c0_13] : memref<1x288x9xbf16, #tpu.memory_space<vmem>>, vector<1x128x9xbf16>
    %21 = vector.shape_cast %20 : vector<1x128x9xbf16> to vector<128x9xbf16>
    %c2 = arith.constant 2 : index
    %c0_14 = arith.constant 0 : index
    %c0_15 = arith.constant 0 : index
    %22 = vector.load %arg2[%c2, %c0_14, %c0_15] : memref<3x9x128xbf16, #tpu.memory_space<vmem>>, vector<1x9x128xbf16>
    %23 = vector.shape_cast %22 : vector<1x9x128xbf16> to vector<9x128xbf16>
    %cst_16 = arith.constant dense<0.000000e+00> : vector<128x128xf32>
    %24 = tpu.matmul %21, %23, %cst_16 {dimension_numbers = #tpu.dot_dimension_numbers<[1], [0], [0], [1], [0, 0, 1, 1], [], []>} : vector<128x9xbf16>, vector<9x128xbf16>, vector<128x128xf32> -> vector<128x128xf32>
    %25 = arith.addf %17, %24 : vector<128x128xf32>
    %26 = vector.broadcast %0 : vector<1x128xf32> to vector<128x128xf32>
    %27 = arith.addf %25, %26 : vector<128x128xf32>
    %cst_17 = arith.constant 0.000000e+00 : f32
    %28 = vector.broadcast %cst_17 : f32 to vector<128x128xf32>
    %29 = arith.maximumf %27, %28 : vector<128x128xf32>
    %30 = arith.index_cast %c0_i32 : i32 to index
    %c0_18 = arith.constant 0 : index
    %c0_19 = arith.constant 0 : index
    %31 = vector.load %arg4[%30, %c0_18, %c0_19] : memref<2x1x128xf32, #tpu.memory_space<vmem>>, vector<1x1x128xf32>
    %32 = vector.shape_cast %31 : vector<1x1x128xf32> to vector<1x128xf32>
    %cst_20 = arith.constant dense<0.000000e+00> : vector<1x128xf32>
    %33 = tpu.matmul %32, %29, %cst_20 {dimension_numbers = #tpu.dot_dimension_numbers<[1], [0], [0], [1], [0, 0, 1, 1], [], []>} : vector<1x128xf32>, vector<128x128xf32>, vector<1x128xf32> -> vector<1x128xf32>
    %34 = arith.addf %1, %33 : vector<1x128xf32>
    %c1_i32 = arith.constant 1 : i32
    %c128_i32_21 = arith.constant 128 : i32
    %35 = arith.muli %c1_i32, %c128_i32_21 : i32
    %36 = tpu.assume_multiple %35, 128 : i32
    %c0_22 = arith.constant 0 : index
    %37 = arith.index_cast %36 : i32 to index
    %c0_23 = arith.constant 0 : index
    %38 = vector.load %arg1[%c0_22, %37, %c0_23] : memref<1x288x9xbf16, #tpu.memory_space<vmem>>, vector<1x128x9xbf16>
    %39 = vector.shape_cast %38 : vector<1x128x9xbf16> to vector<128x9xbf16>
    %c0_24 = arith.constant 0 : index
    %c0_25 = arith.constant 0 : index
    %c0_26 = arith.constant 0 : index
    %40 = vector.load %arg2[%c0_24, %c0_25, %c0_26] : memref<3x9x128xbf16, #tpu.memory_space<vmem>>, vector<1x9x128xbf16>
    %41 = vector.shape_cast %40 : vector<1x9x128xbf16> to vector<9x128xbf16>
    %cst_27 = arith.constant dense<0.000000e+00> : vector<128x128xf32>
    %42 = tpu.matmul %39, %41, %cst_27 {dimension_numbers = #tpu.dot_dimension_numbers<[1], [0], [0], [1], [0, 0, 1, 1], [], []>} : vector<128x9xbf16>, vector<9x128xbf16>, vector<128x128xf32> -> vector<128x128xf32>
    %c16_i32_28 = arith.constant 16 : i32
    %43 = arith.addi %36, %c16_i32_28 : i32
    %c0_29 = arith.constant 0 : index
    %44 = arith.index_cast %43 : i32 to index
    %c0_30 = arith.constant 0 : index
    %45 = vector.load %arg1[%c0_29, %44, %c0_30] : memref<1x288x9xbf16, #tpu.memory_space<vmem>>, vector<1x128x9xbf16>
    %46 = vector.shape_cast %45 : vector<1x128x9xbf16> to vector<128x9xbf16>
    %c1_31 = arith.constant 1 : index
    %c0_32 = arith.constant 0 : index
    %c0_33 = arith.constant 0 : index
    %47 = vector.load %arg2[%c1_31, %c0_32, %c0_33] : memref<3x9x128xbf16, #tpu.memory_space<vmem>>, vector<1x9x128xbf16>
    %48 = vector.shape_cast %47 : vector<1x9x128xbf16> to vector<9x128xbf16>
    %cst_34 = arith.constant dense<0.000000e+00> : vector<128x128xf32>
    %49 = tpu.matmul %46, %48, %cst_34 {dimension_numbers = #tpu.dot_dimension_numbers<[1], [0], [0], [1], [0, 0, 1, 1], [], []>} : vector<128x9xbf16>, vector<9x128xbf16>, vector<128x128xf32> -> vector<128x128xf32>
    %50 = arith.addf %42, %49 : vector<128x128xf32>
    %c32_i32_35 = arith.constant 32 : i32
    %51 = arith.addi %36, %c32_i32_35 : i32
    %c0_36 = arith.constant 0 : index
    %52 = arith.index_cast %51 : i32 to index
    %c0_37 = arith.constant 0 : index
    %53 = vector.load %arg1[%c0_36, %52, %c0_37] : memref<1x288x9xbf16, #tpu.memory_space<vmem>>, vector<1x128x9xbf16>
    %54 = vector.shape_cast %53 : vector<1x128x9xbf16> to vector<128x9xbf16>
    %c2_38 = arith.constant 2 : index
    %c0_39 = arith.constant 0 : index
    %c0_40 = arith.constant 0 : index
    %55 = vector.load %arg2[%c2_38, %c0_39, %c0_40] : memref<3x9x128xbf16, #tpu.memory_space<vmem>>, vector<1x9x128xbf16>
    %56 = vector.shape_cast %55 : vector<1x9x128xbf16> to vector<9x128xbf16>
    %cst_41 = arith.constant dense<0.000000e+00> : vector<128x128xf32>
    %57 = tpu.matmul %54, %56, %cst_41 {dimension_numbers = #tpu.dot_dimension_numbers<[1], [0], [0], [1], [0, 0, 1, 1], [], []>} : vector<128x9xbf16>, vector<9x128xbf16>, vector<128x128xf32> -> vector<128x128xf32>
    %58 = arith.addf %50, %57 : vector<128x128xf32>
    %59 = vector.broadcast %0 : vector<1x128xf32> to vector<128x128xf32>
    %60 = arith.addf %58, %59 : vector<128x128xf32>
    %cst_42 = arith.constant 0.000000e+00 : f32
    %61 = vector.broadcast %cst_42 : f32 to vector<128x128xf32>
    %62 = arith.maximumf %60, %61 : vector<128x128xf32>
    %63 = arith.index_cast %c1_i32 : i32 to index
    %c0_43 = arith.constant 0 : index
    %c0_44 = arith.constant 0 : index
    %64 = vector.load %arg4[%63, %c0_43, %c0_44] : memref<2x1x128xf32, #tpu.memory_space<vmem>>, vector<1x1x128xf32>
    %65 = vector.shape_cast %64 : vector<1x1x128xf32> to vector<1x128xf32>
    %cst_45 = arith.constant dense<0.000000e+00> : vector<1x128xf32>
    %66 = tpu.matmul %65, %62, %cst_45 {dimension_numbers = #tpu.dot_dimension_numbers<[1], [0], [0], [1], [0, 0, 1, 1], [], []>} : vector<1x128xf32>, vector<128x128xf32>, vector<1x128xf32> -> vector<1x128xf32>
    %67 = arith.addf %34, %66 : vector<1x128xf32>
    %c2_i32 = arith.constant 2 : i32
    %c0_46 = arith.constant 0 : index
    %c0_47 = arith.constant 0 : index
    %68 = vector.load %arg5[%c0_46, %c0_47] : memref<128x128xf32, #tpu.memory_space<vmem>>, vector<128x128xf32>
    %cst_48 = arith.constant dense<0.000000e+00> : vector<1x128xf32>
    %69 = tpu.matmul %67, %68, %cst_48 {dimension_numbers = #tpu.dot_dimension_numbers<[1], [0], [0], [1], [0, 0, 1, 1], [], []>} : vector<1x128xf32>, vector<128x128xf32>, vector<1x128xf32> -> vector<1x128xf32>
    %c0_49 = arith.constant 0 : index
    %c0_50 = arith.constant 0 : index
    %70 = vector.load %arg6[%c0_49, %c0_50] : memref<1x128xf32, #tpu.memory_space<vmem>>, vector<1x128xf32>
    %71 = arith.addf %69, %70 : vector<1x128xf32>
    %c0_51 = arith.constant 0 : index
    %c0_52 = arith.constant 0 : index
    %c0_53 = arith.constant 0 : index
    %72 = vector.load %arg7[%c0_51, %c0_52, %c0_53] : memref<1x1x128xf32, #tpu.memory_space<vmem>>, vector<1x1x128xf32>
    %73 = vector.shape_cast %72 : vector<1x1x128xf32> to vector<1x128xf32>
    %74 = vector.shape_cast %71 : vector<1x128xf32> to vector<1x1x128xf32>
    tpu.vector_store %arg7[%c0_51, %c0_52, %c0_53], %74 {strides = array<i32>} : memref<1x1x128xf32, #tpu.memory_space<vmem>>, vector<1x1x128xf32>,
    return
  }
  func.func @transform_0(%arg0: i32) -> (i32, i32, i32) {
    %c0_i32 = arith.constant 0 : i32
    %c0_i32_0 = arith.constant 0 : i32
    %c0_i32_1 = arith.constant 0 : i32
    return %arg0, %c0_i32, %c0_i32_0 : i32, i32, i32
  }
  func.func @transform_1(%arg0: i32) -> (i32, i32, i32) {
    %c0_i32 = arith.constant 0 : i32
    %c0_i32_0 = arith.constant 0 : i32
    %c0_i32_1 = arith.constant 0 : i32
    %c0_i32_2 = arith.constant 0 : i32
    return %c0_i32, %c0_i32_0, %c0_i32_1 : i32, i32, i32
  }
  func.func @transform_2(%arg0: i32) -> (i32, i32) {
    %c0_i32 = arith.constant 0 : i32
    %c0_i32_0 = arith.constant 0 : i32
    %c0_i32_1 = arith.constant 0 : i32
    return %c0_i32, %c0_i32_0 : i32, i32
  }
  func.func @transform_3(%arg0: i32) -> (i32, i32, i32) {
    %c0_i32 = arith.constant 0 : i32
    %c0_i32_0 = arith.constant 0 : i32
    %c0_i32_1 = arith.constant 0 : i32
    %c0_i32_2 = arith.constant 0 : i32
    return %c0_i32, %c0_i32_0, %c0_i32_1 : i32, i32, i32
  }
  func.func @transform_4(%arg0: i32) -> (i32, i32) {
    %c0_i32 = arith.constant 0 : i32
    %c0_i32_0 = arith.constant 0 : i32
    %c0_i32_1 = arith.constant 0 : i32
    return %c0_i32, %c0_i32_0 : i32, i32
  }
  func.func @transform_5(%arg0: i32) -> (i32, i32) {
    %c0_i32 = arith.constant 0 : i32
    %c0_i32_0 = arith.constant 0 : i32
    %c0_i32_1 = arith.constant 0 : i32
    return %c0_i32, %c0_i32_0 : i32, i32
  }
  func.func @transform_6(%arg0: i32) -> (i32, i32, i32) {
    %c0_i32 = arith.constant 0 : i32
    %c0_i32_0 = arith.constant 0 : i32
    %c0_i32_1 = arith.constant 0 : i32
    return %arg0, %c0_i32, %c0_i32_0 : i32, i32, i32
  }
}

</mosaic_0001>

<llo_original>
// kernel: tpu_custom_call.1
$region0: #{tpu_custom_call.1}
  #allocation0 [shape = 'u32[]', space=smem, size = 0x4, offset = 0x4, fixed_abs, tag = 'smem constant byte address 0x4 - core index']
  #allocation1 [shape = 'u32[72,128]{1,0:T(1,128)}', space=vmem, size = 0x9000, scoped, tag = 'internal scratch']
  %s0 = inlined_call_operand.vmem [shape: bf16[2,288,9], index: 0, kind: input, shape index: {}]
  %s1 = inlined_call_operand.vmem [shape: bf16[3,9,128], index: 1, kind: input, shape index: {}]
  %s2 = inlined_call_operand.vmem [shape: f32[1,128], index: 2, kind: input, shape index: {}]
  %s3 = inlined_call_operand.vmem [shape: f32[2,1,128], index: 3, kind: input, shape index: {}]
  %s4 = inlined_call_operand.vmem [shape: f32[128,128], index: 4, kind: input, shape index: {}]
  %s5 = inlined_call_operand.vmem [shape: f32[1,128], index: 5, kind: input, shape index: {}]
  %s6 = inlined_call_operand.hbm [shape: f32[2,1,128], index: 6, kind: output, shape index: {}]
  %s7 = sld [smem:[#allocation0]]
  $region57: #{tpu_custom_call.1} parent=0
    _
  %s9 = ssub.s32 1, %s7
  %s10 = scalar_select 0, %s9, %s7
  $region1: #{tpu_custom_call.1} parent=0
    #allocation2 [shape = 'u8[1024]{0}', space=vmem, size = 0x400, scoped, tag = 'output window, operand 0']
    #allocation3 [shape = 's32[2]{0}', space=sflag, size = 0x8, scoped, tag = 'scoped memory for tpu_custom_call.1']
    %11 = vsyncpa [#allocation3], 0
    %s12 = scalar_lea.sflag [#allocation3], 1
    %13 = vsyncpa %s12, 0
    loop: start=0, step=1, limit=4
    $region2: #{tpu_custom_call.1} parent=1 // loop_pre_header
      _
    $region3: #{tpu_custom_call.1} parent=1 // loop_header
      %s15 = sphi 0, %s19
      %p16 = scmp.ge.s32.totalorder %s15, 4
      %s25 = sphi 0, %s27
      %s28 = sphi 0, %s25
      %s29 = sphi 0, %s28
      %s45 = sphi 0, %s29
      %s49 = sphi 0, %s49
      %s51 = sphi 0, %s49
      %s52 = sphi 0, %s51
      %s66 = sphi 0, %s52
      %s70 = sphi 0, %s70
      %s72 = sphi 0, %s70
      %s73 = sphi 0, %s72
      %s87 = sphi 0, %s73
      %s91 = sphi 0, %s91
      %s93 = sphi 0, %s91
      %s94 = sphi 0, %s93
      %s108 = sphi 0, %s94
      %s112 = sphi 0, %s112
      %s114 = sphi 0, %s112
      %s115 = sphi 0, %s114
      %s129 = sphi 0, %s115
      %s133 = sphi 0, %s133
      %s135 = sphi 0, %s133
      %s136 = sphi 0, %s135
      %s150 = sphi 0, %s136
      %s156 = sphi 0, %s158
      %s159 = sphi 0, %s156
      %s160 = sphi 0, %s159
      %s176 = sphi 0, %s160
    $region4: #{tpu_custom_call.1} parent=1 // loop_header_branch
      %18 = sbr.rel (%p16) target = $region8
    $region5: #{tpu_custom_call.1} parent=1 // loop_body
      %s20 = ssub.s32 %s15, 1
      %s21 = ssub.s32 %s15, 2
      %s22 = sadd.s32 %s15, 1
      %s23 = ssub.s32 %s15, %s22
      %p24 = scmp.eq.s32.totalorder %s23, 0
      %s26 = sadd.s32 %s25, 1
      %s27 = scalar_select %p24, %s25, %s26
      %p30 = pneg %p24
      %p31 = scmp.eq.s32.totalorder %s15, 1
      %p32 = por %p30, %p31
      %p33 = scmp.ne.s32.totalorder %s25, %s28
      %p34 = scmp.eq.s32.totalorder %s15, 0
      %p35 = por %p33, %p34
      %p36 = scmp.ne.s32.totalorder %s25, %s28
      %p37 = scmp.eq.s32.totalorder %s20, 1
      %p38 = por %p36, %p37
      %p39 = scmp.ne.s32.totalorder %s28, %s29
      %p40 = scmp.eq.s32.totalorder %s20, 0
      %p41 = por %p39, %p40
      %p42 = scmp.ne.s32.totalorder %s28, %s29
      %p43 = scmp.eq.s32.totalorder %s21, 1
      %p44 = por %p42, %p43
      %p46 = scmp.ne.s32.totalorder %s29, %s45
      %p47 = scmp.eq.s32.totalorder %s21, 0
      %p48 = por %p46, %p47
      %s50 = sadd.s32 %s49, 1
      %p53 = scmp.eq.s32.totalorder %s15, 1
      %p54 = scmp.ne.s32.totalorder %s49, %s51
      %p55 = scmp.eq.s32.totalorder %s15, 0
      %p56 = por %p54, %p55
      %p57 = scmp.ne.s32.totalorder %s49, %s51
      %p58 = scmp.eq.s32.totalorder %s20, 1
      %p59 = por %p57, %p58
      %p60 = scmp.ne.s32.totalorder %s51, %s52
      %p61 = scmp.eq.s32.totalorder %s20, 0
      %p62 = por %p60, %p61
      %p63 = scmp.ne.s32.totalorder %s51, %s52
      %p64 = scmp.eq.s32.totalorder %s21, 1
      %p65 = por %p63, %p64
      %p67 = scmp.ne.s32.totalorder %s52, %s66
      %p68 = scmp.eq.s32.totalorder %s21, 0
      %p69 = por %p67, %p68
      %s71 = sadd.s32 %s70, 1
      %p74 = scmp.eq.s32.totalorder %s15, 1
      %p75 = scmp.ne.s32.totalorder %s70, %s72
      %p76 = scmp.eq.s32.totalorder %s15, 0
      %p77 = por %p75, %p76
      %p78 = scmp.ne.s32.totalorder %s70, %s72
      %p79 = scmp.eq.s32.totalorder %s20, 1
      %p80 = por %p78, %p79
      %p81 = scmp.ne.s32.totalorder %s72, %s73
      %p82 = scmp.eq.s32.totalorder %s20, 0
      %p83 = por %p81, %p82
      %p84 = scmp.ne.s32.totalorder %s72, %s73
      %p85 = scmp.eq.s32.totalorder %s21, 1
      %p86 = por %p84, %p85
      %p88 = scmp.ne.s32.totalorder %s73, %s87
      %p89 = scmp.eq.s32.totalorder %s21, 0
      %p90 = por %p88, %p89
      %s92 = sadd.s32 %s91, 1
      %p95 = scmp.eq.s32.totalorder %s15, 1
      %p96 = scmp.ne.s32.totalorder %s91, %s93
      %p97 = scmp.eq.s32.totalorder %s15, 0
      %p98 = por %p96, %p97
      %p99 = scmp.ne.s32.totalorder %s91, %s93
      %p100 = scmp.eq.s32.totalorder %s20, 1
      %p101 = por %p99, %p100
      %p102 = scmp.ne.s32.totalorder %s93, %s94
      %p103 = scmp.eq.s32.totalorder %s20, 0
      %p104 = por %p102, %p103
      %p105 = scmp.ne.s32.totalorder %s93, %s94
      %p106 = scmp.eq.s32.totalorder %s21, 1
      %p107 = por %p105, %p106
      %p109 = scmp.ne.s32.totalorder %s94, %s108
      %p110 = scmp.eq.s32.totalorder %s21, 0
      %p111 = por %p109, %p110
      %s113 = sadd.s32 %s112, 1
      %p116 = scmp.eq.s32.totalorder %s15, 1
      %p117 = scmp.ne.s32.totalorder %s112, %s114
      %p118 = scmp.eq.s32.totalorder %s15, 0
      %p119 = por %p117, %p118
      %p120 = scmp.ne.s32.totalorder %s112, %s114
      %p121 = scmp.eq.s32.totalorder %s20, 1
      %p122 = por %p120, %p121
      %p123 = scmp.ne.s32.totalorder %s114, %s115
      %p124 = scmp.eq.s32.totalorder %s20, 0
      %p125 = por %p123, %p124
      %p126 = scmp.ne.s32.totalorder %s114, %s115
      %p127 = scmp.eq.s32.totalorder %s21, 1
      %p128 = por %p126, %p127
      %p130 = scmp.ne.s32.totalorder %s115, %s129
      %p131 = scmp.eq.s32.totalorder %s21, 0
      %p132 = por %p130, %p131
      %s134 = sadd.s32 %s133, 1
      %p137 = scmp.eq.s32.totalorder %s15, 1
      %p138 = scmp.ne.s32.totalorder %s133, %s135
      %p139 = scmp.eq.s32.totalorder %s15, 0
      %p140 = por %p138, %p139
      %p141 = scmp.ne.s32.totalorder %s133, %s135
      %p142 = scmp.eq.s32.totalorder %s20, 1
      %p143 = por %p141, %p142
      %p144 = scmp.ne.s32.totalorder %s135, %s136
      %p145 = scmp.eq.s32.totalorder %s20, 0
      %p146 = por %p144, %p145
      %p147 = scmp.ne.s32.totalorder %s135, %s136
      %p148 = scmp.eq.s32.totalorder %s21, 1
      %p149 = por %p147, %p148
      %p151 = scmp.ne.s32.totalorder %s136, %s150
      %p152 = scmp.eq.s32.totalorder %s21, 0
      %p153 = por %p151, %p152
      %s154 = ssub.s32 %s15, %s22
      %p155 = scmp.eq.s32.totalorder %s154, 0
      %s157 = sadd.s32 %s156, 1
      %s158 = scalar_select %p155, %s156, %s157
      %p161 = pneg %p155
      %p162 = scmp.eq.s32.totalorder %s15, 1
      %p163 = por %p161, %p162
      %p164 = scmp.ne.s32.totalorder %s156, %s159
      %p165 = scmp.eq.s32.totalorder %s15, 0
      %p166 = por %p164, %p165
      %p167 = scmp.ne.s32.totalorder %s156, %s159
      %p168 = scmp.eq.s32.totalorder %s20, 1
      %p169 = por %p167, %p168
      %p170 = scmp.ne.s32.totalorder %s159, %s160
      %p171 = scmp.eq.s32.totalorder %s20, 0
      %p172 = por %p170, %p171
      %p173 = scmp.ne.s32.totalorder %s159, %s160
      %p174 = scmp.eq.s32.totalorder %s21, 1
      %p175 = por %p173, %p174
      %p177 = scmp.ne.s32.totalorder %s160, %s176
      %p178 = scmp.eq.s32.totalorder %s21, 0
      %p179 = por %p177, %p178
      %p180 = scmp.le.s32.totalorder 1, %s15
      %p181 = scmp.lt.s32.totalorder %s15, 3
      %p182 = pnand %p180, %p181
      %p183 = pneg %p182
      // Predicated region
      $region9: #{tpu_custom_call.1} parent=5 // pred_check
        _
      $region10: #{tpu_custom_call.1} parent=5 // pred_check_branch
        %185 = sbr.rel (%p182) target = $region12
      $region11: #{tpu_custom_call.1} parent=5 // pred_region
        %s186 = ssub.s32 %s15, 1
        // Predicated region
        $region13: #{tpu_custom_call.1} parent=11 // pred_check
          %p187 = pneg %p62
        $region14: #{tpu_custom_call.1} parent=11 // pred_check_branch
          %189 = sbr.rel (%p187) target = $region16
        $region15: #{tpu_custom_call.1} parent=11 // pred_region
          _
        $region16: #{tpu_custom_call.1} parent=11 // pred_fallthru
          _
        // Predicated region
        $region17: #{tpu_custom_call.1} parent=11 // pred_check
          %p190 = pneg %p83
        $region18: #{tpu_custom_call.1} parent=11 // pred_check_branch
          %192 = sbr.rel (%p190) target = $region20
        $region19: #{tpu_custom_call.1} parent=11 // pred_region
          _
        $region20: #{tpu_custom_call.1} parent=11 // pred_fallthru
          _
        // Predicated region
        $region21: #{tpu_custom_call.1} parent=11 // pred_check
          %p193 = pneg %p104
        $region22: #{tpu_custom_call.1} parent=11 // pred_check_branch
          %195 = sbr.rel (%p193) target = $region24
        $region23: #{tpu_custom_call.1} parent=11 // pred_region
          _
        $region24: #{tpu_custom_call.1} parent=11 // pred_fallthru
          _
        // Predicated region
        $region25: #{tpu_custom_call.1} parent=11 // pred_check
          %p196 = pneg %p125
        $region26: #{tpu_custom_call.1} parent=11 // pred_check_branch
          %198 = sbr.rel (%p196) target = $region28
        $region27: #{tpu_custom_call.1} parent=11 // pred_region
          _
        $region28: #{tpu_custom_call.1} parent=11 // pred_fallthru
          _
        // Predicated region
        $region29: #{tpu_custom_call.1} parent=11 // pred_check
          %p199 = pneg %p146
        $region30: #{tpu_custom_call.1} parent=11 // pred_check_branch
          %201 = sbr.rel (%p199) target = $region32
        $region31: #{tpu_custom_call.1} parent=11 // pred_region
          _
        $region32: #{tpu_custom_call.1} parent=11 // pred_fallthru
          _
      $region12: #{tpu_custom_call.1} parent=5 // pred_fallthru
        _
      %p202 = scmp.lt.s32.totalorder %s15, 2
      // Predicated region
      $region33: #{tpu_custom_call.1} parent=5 // pred_check
        %p203 = pneg %p202
      $region34: #{tpu_custom_call.1} parent=5 // pred_check_branch
        %205 = sbr.rel (%p203) target = $region36
      $region35: #{tpu_custom_call.1} parent=5 // pred_region
        // Predicated region
        $region37: #{tpu_custom_call.1} parent=35 // pred_check
          %p206 = pneg %p35
        $region38: #{tpu_custom_call.1} parent=35 // pred_check_branch
          %208 = sbr.rel (%p206) target = $region40
        $region39: #{tpu_custom_call.1} parent=35 // pred_region
          %p209 = scmp.lt.s32.totalorder %s15, 1
          %s210 = scalar_select %p209, %s15, 1
          %s211 = smul.addr %s210, 36
          %s212 = smul.addr %s211, 4
          %s213 = scalar_lea.vmem %s0, %s212
        $region40: #{tpu_custom_call.1} parent=35 // pred_fallthru
          _
      $region36: #{tpu_custom_call.1} parent=5 // pred_fallthru
        _
      %p214 = scmp.le.s32.totalorder 1, %s15
      %p215 = scmp.lt.s32.totalorder %s15, 3
      %p216 = pnand %p214, %p215
      %p217 = pneg %p216
      // Predicated region
      $region41: #{tpu_custom_call.1} parent=5 // pred_check
        _
      $region42: #{tpu_custom_call.1} parent=5 // pred_check_branch
        %219 = sbr.rel (%p216) target = $region44
      $region43: #{tpu_custom_call.1} parent=5 // pred_region
        %s220 = ssub.s32 %s15, 1
        %p221 = scmp.lt.s32.totalorder %s20, 1
        %s222 = scalar_select %p221, %s20, 1
        %s223 = smul.addr %s222, 36
        %s224 = smul.addr %s223, 4
        %s225 = scalar_lea.vmem %s0, %s224
        %p226 = pneg %p41
        %p227 = pneg %p38
        %p228 = pneg %p62
        %p229 = pneg %p59
        %p230 = pneg %p83
        %p231 = pneg %p80
        %p232 = pneg %p104
        %p233 = pneg %p101
        %p234 = pneg %p125
        %p235 = pneg %p122
        %p236 = pneg %p146
        %p237 = pneg %p143
        %p238 = pneg %p172
        %p239 = pneg %p169
        %s240 = sand.u32 %s159, 1
        %s241 = scalar_lea.sflag [#allocation3], %s240
        %s242 = sand.u32 %s159, 1
        %s243 = scalar_lea.vmem [#allocation2], %s242
        %p244 = scmp.lt.s32.totalorder %s20, 1
        %s245 = scalar_select %p244, %s20, 1
        %s246 = smul.addr %s245, 36
        %s247 = smul.addr %s246, 4
        %s248 = scalar_lea.vmem %s0, %s247
        %v250 = vld [vmem:[%s2] sm:$0x1]
        %v251 = vld [vmem:[%s248] sm:$0xf]
        %v252 = vld [vmem:[%s248 + $0x4] sm:$0xf]
        %v253 = vld [vmem:[%s248 + $0x8] sm:$0xf]
        %v254 = vld [vmem:[%s248 + $0xc] sm:$0xf]
        %v255 = vld [vmem:[%s248 + $0x10] sm:$0xf]
        %v256 = vld [vmem:[%s248 + $0x14] sm:$0xf]
        %v257 = vld [vmem:[%s248 + $0x18] sm:$0xf]
        %v258 = vld [vmem:[%s248 + $0x1c] sm:$0xf]
        %v259 = vld [vmem:[%s248 + $0x20] sm:$0xf]
        %v260 = vld [vmem:[%s248 + $0x24] sm:$0xf]
        %v261 = vld [vmem:[%s248 + $0x28] sm:$0xf]
        %v262 = vld [vmem:[%s248 + $0x2c] sm:$0xf]
        %v263 = vld [vmem:[%s248 + $0x30] sm:$0xf]
        %v264 = vld [vmem:[%s248 + $0x34] sm:$0xf]
        %v265 = vld [vmem:[%s248 + $0x38] sm:$0xf]
        %v266 = vld [vmem:[%s248 + $0x3c] sm:$0xf]
        %v267 = vld [vmem:[%s1] sm:$0xf]
        %v268 = vld [vmem:[%s1 + $0x4] sm:$0x1]
        %s269 = sadd.s32 0, 16
        %s270 = sshra.s32 %s269, 3
        %s271 = sand.u32 %s269, 7
        %s272 = smul.addr %s270, 4
        %s273 = scalar_lea.vmem %s248, %s272
        %v274 = vld [vmem:[%s273] sm:$0xf]
        %v275 = vld [vmem:[%s273 + $0x4] sm:$0xf]
        %v276 = vld [vmem:[%s273 + $0x8] sm:$0xf]
        %v277 = vld [vmem:[%s273 + $0xc] sm:$0xf]
        %v278 = vld [vmem:[%s273 + $0x10] sm:$0xf]
        %v279 = vld [vmem:[%s273 + $0x14] sm:$0xf]
        %v280 = vld [vmem:[%s273 + $0x18] sm:$0xf]
        %v281 = vld [vmem:[%s273 + $0x1c] sm:$0xf]
        %v282 = vld [vmem:[%s273 + $0x20] sm:$0xf]
        %v283 = vld [vmem:[%s273 + $0x24] sm:$0xf]
        %v284 = vld [vmem:[%s273 + $0x28] sm:$0xf]
        %v285 = vld [vmem:[%s273 + $0x2c] sm:$0xf]
        %v286 = vld [vmem:[%s273 + $0x30] sm:$0xf]
        %v287 = vld [vmem:[%s273 + $0x34] sm:$0xf]
        %v288 = vld [vmem:[%s273 + $0x38] sm:$0xf]
        %v289 = vld [vmem:[%s273 + $0x3c] sm:$0xf]
        %s290 = scalar_lea.vmem %s1, 8
        %v291 = vld [vmem:[%s290] sm:$0xf]
        %v292 = vld [vmem:[%s290 + $0x4] sm:$0x1]
        %v309 = vunpack.c.l.b16 %v274
        %v310 = vunpack.c.l.b16 %v275
        %v311 = vunpack.c.l.b16 %v276
        %v312 = vunpack.c.l.b16 %v277
        %v313 = vunpack.c.l.b16 %v278
        %v314 = vunpack.c.l.b16 %v279
        %v315 = vunpack.c.l.b16 %v280
        %v316 = vunpack.c.l.b16 %v281
        %v317 = vunpack.c.l.b16 %v282
        %v318 = vunpack.c.l.b16 %v283
        %v319 = vunpack.c.l.b16 %v284
        %v320 = vunpack.c.l.b16 %v285
        %v321 = vunpack.c.l.b16 %v286
        %v322 = vunpack.c.l.b16 %v287
        %v323 = vunpack.c.l.b16 %v288
        %v324 = vunpack.c.l.b16 %v289
        %v325 = vpack.c.b16 %v310, %v309
        %v326 = vpack.c.b16 %v312, %v311
        %v327 = vpack.c.b16 %v314, %v313
        %v328 = vpack.c.b16 %v316, %v315
        %v329 = vpack.c.b16 %v318, %v317
        %v330 = vpack.c.b16 %v320, %v319
        %v331 = vpack.c.b16 %v322, %v321
        %v332 = vpack.c.b16 %v324, %v323
        %v335 = vunpack.c.l.b16 %v291
        %v336 = vunpack.c.l.b16 %v292
        %v337 = vpack.c.b16 %v336, %v335
        %vm338 = vcmask 72704
        %v340 = vsel %vm338, %v325, 0
        %v343 = vsel %vm338, %v326, 0
        %v346 = vsel %vm338, %v327, 0
        %v349 = vsel %vm338, %v328, 0
        %v352 = vsel %vm338, %v329, 0
        %v355 = vsel %vm338, %v330, 0
        %v358 = vsel %vm338, %v331, 0
        %v361 = vsel %vm338, %v332, 0
        %vm363 = vcmask 1043456
        %vm364 = vcmask 1044480
        %v365 = vsel %vm363, 4294967295, 65535
        %v366 = vsel %vm364, %v365, 0
        %v368 = vand.u32 %v337, %v366
        %370 = vmatpush.bf16.msra.mxu0 0
        %371 = vmatpush.bf16.msra.mxu0 0
        %372 = vmatpush.bf16.msra.mxu0 0
        %373 = vmatpush.bf16.msra.mxu0 0
        %374 = vmatpush.bf16.msra.mxu0 0
        %375 = vmatpush.bf16.msra.mxu0 0
        %376 = vmatpush.bf16.msra.mxu0 0
        %377 = vmatpush.bf16.msra.mxu0 %v368
        %378 = vmatmul.bf16.gmra.mxu0 %v340
        %v379 = vpop.f32.mrf.mxu0
        %v380 = vadd.f32 0.0, %v379
        %v381 = vpop.f32.mrf.mxu0
        %v382 = vadd.f32 0.0, %v381
        %383 = vmatmul.bf16.gmra.mxu0 %v343
        %v384 = vpop.f32.mrf.mxu0
        %v385 = vadd.f32 0.0, %v384
        %v386 = vpop.f32.mrf.mxu0
        %v387 = vadd.f32 0.0, %v386
        %388 = vmatmul.bf16.gmra.mxu0 %v346
        %v389 = vpop.f32.mrf.mxu0
        %v390 = vadd.f32 0.0, %v389
        %v391 = vpop.f32.mrf.mxu0
        %v392 = vadd.f32 0.0, %v391
        %393 = vmatmul.bf16.gmra.mxu0 %v349
        %v394 = vpop.f32.mrf.mxu0
        %v395 = vadd.f32 0.0, %v394
        %v396 = vpop.f32.mrf.mxu0
        %v397 = vadd.f32 0.0, %v396
        %398 = vmatmul.bf16.gmra.mxu0 %v352
        %v399 = vpop.f32.mrf.mxu0
        %v400 = vadd.f32 0.0, %v399
        %v401 = vpop.f32.mrf.mxu0
        %v402 = vadd.f32 0.0, %v401
        %403 = vmatmul.bf16.gmra.mxu0 %v355
        %v404 = vpop.f32.mrf.mxu0
        %v405 = vadd.f32 0.0, %v404
        %v406 = vpop.f32.mrf.mxu0
        %v407 = vadd.f32 0.0, %v406
        %408 = vmatmul.bf16.gmra.mxu0 %v358
        %v409 = vpop.f32.mrf.mxu0
        %v410 = vadd.f32 0.0, %v409
        %v411 = vpop.f32.mrf.mxu0
        %v412 = vadd.f32 0.0, %v411
        %413 = vmatmul.bf16.gmra.mxu0 %v361
        %v414 = vpop.f32.mrf.mxu0
        %v415 = vadd.f32 0.0, %v414
        %v416 = vpop.f32.mrf.mxu0
        %v417 = vadd.f32 0.0, %v416
        %418 = vdwg.mxu0
        %v435 = vunpack.c.l.b16 %v251
        %v436 = vunpack.c.l.b16 %v252
        %v437 = vunpack.c.l.b16 %v253
        %v438 = vunpack.c.l.b16 %v254
        %v439 = vunpack.c.l.b16 %v255
        %v440 = vunpack.c.l.b16 %v256
        %v441 = vunpack.c.l.b16 %v257
        %v442 = vunpack.c.l.b16 %v258
        %v443 = vunpack.c.l.b16 %v259
        %v444 = vunpack.c.l.b16 %v260
        %v445 = vunpack.c.l.b16 %v261
        %v446 = vunpack.c.l.b16 %v262
        %v447 = vunpack.c.l.b16 %v263
        %v448 = vunpack.c.l.b16 %v264
        %v449 = vunpack.c.l.b16 %v265
        %v450 = vunpack.c.l.b16 %v266
        %v451 = vpack.c.b16 %v436, %v435
        %v452 = vpack.c.b16 %v438, %v437
        %v453 = vpack.c.b16 %v440, %v439
        %v454 = vpack.c.b16 %v442, %v441
        %v455 = vpack.c.b16 %v444, %v443
        %v456 = vpack.c.b16 %v446, %v445
        %v457 = vpack.c.b16 %v448, %v447
        %v458 = vpack.c.b16 %v450, %v449
        %v461 = vunpack.c.l.b16 %v267
        %v462 = vunpack.c.l.b16 %v268
        %v463 = vpack.c.b16 %v462, %v461
        %v465 = vsel %vm338, %v451, 0
        %v468 = vsel %vm338, %v452, 0
        %v471 = vsel %vm338, %v453, 0
        %v474 = vsel %vm338, %v454, 0
        %v477 = vsel %vm338, %v455, 0
        %v480 = vsel %vm338, %v456, 0
        %v483 = vsel %vm338, %v457, 0
        %v486 = vsel %vm338, %v458, 0
        %v489 = vand.u32 %v463, %v366
        %491 = vmatpush.bf16.msra.mxu0 0
        %492 = vmatpush.bf16.msra.mxu0 0
        %493 = vmatpush.bf16.msra.mxu0 0
        %494 = vmatpush.bf16.msra.mxu0 0
        %495 = vmatpush.bf16.msra.mxu0 0
        %496 = vmatpush.bf16.msra.mxu0 0
        %497 = vmatpush.bf16.msra.mxu0 0
        %498 = vmatpush.bf16.msra.mxu0 %v489
        %499 = vmatmul.bf16.gmra.mxu0 %v465
        %v500 = vpop.f32.mrf.mxu0
        %v501 = vadd.f32 %v380, %v500
        %v502 = vpop.f32.mrf.mxu0
        %v503 = vadd.f32 %v382, %v502
        %504 = vmatmul.bf16.gmra.mxu0 %v468
        %v505 = vpop.f32.mrf.mxu0
        %v506 = vadd.f32 %v385, %v505
        %v507 = vpop.f32.mrf.mxu0
        %v508 = vadd.f32 %v387, %v507
        %509 = vmatmul.bf16.gmra.mxu0 %v471
        %v510 = vpop.f32.mrf.mxu0
        %v511 = vadd.f32 %v390, %v510
        %v512 = vpop.f32.mrf.mxu0
        %v513 = vadd.f32 %v392, %v512
        %514 = vmatmul.bf16.gmra.mxu0 %v474
        %v515 = vpop.f32.mrf.mxu0
        %v516 = vadd.f32 %v395, %v515
        %v517 = vpop.f32.mrf.mxu0
        %v518 = vadd.f32 %v397, %v517
        %519 = vmatmul.bf16.gmra.mxu0 %v477
        %v520 = vpop.f32.mrf.mxu0
        %v521 = vadd.f32 %v400, %v520
        %v522 = vpop.f32.mrf.mxu0
        %v523 = vadd.f32 %v402, %v522
        %524 = vmatmul.bf16.gmra.mxu0 %v480
        %v525 = vpop.f32.mrf.mxu0
        %v526 = vadd.f32 %v405, %v525
        %v527 = vpop.f32.mrf.mxu0
        %v528 = vadd.f32 %v407, %v527
        %529 = vmatmul.bf16.gmra.mxu0 %v483
        %v530 = vpop.f32.mrf.mxu0
        %v531 = vadd.f32 %v410, %v530
        %v532 = vpop.f32.mrf.mxu0
        %v533 = vadd.f32 %v412, %v532
        %534 = vmatmul.bf16.gmra.mxu0 %v486
        %v535 = vpop.f32.mrf.mxu0
        %v536 = vadd.f32 %v415, %v535
        %v537 = vpop.f32.mrf.mxu0
        %v538 = vadd.f32 %v417, %v537
        %539 = vdwg.mxu0
        %s540 = sadd.s32 0, 32
        %s541 = sshra.s32 %s540, 3
        %s542 = sand.u32 %s540, 7
        %s543 = smul.addr %s541, 4
        %s544 = scalar_lea.vmem %s248, %s543
        %v545 = vld [vmem:[%s544] sm:$0xf]
        %v546 = vld [vmem:[%s544 + $0x4] sm:$0xf]
        %v547 = vld [vmem:[%s544 + $0x8] sm:$0xf]
        %v548 = vld [vmem:[%s544 + $0xc] sm:$0xf]
        %v549 = vld [vmem:[%s544 + $0x10] sm:$0xf]
        %v550 = vld [vmem:[%s544 + $0x14] sm:$0xf]
        %v551 = vld [vmem:[%s544 + $0x18] sm:$0xf]
        %v552 = vld [vmem:[%s544 + $0x1c] sm:$0xf]
        %v553 = vld [vmem:[%s544 + $0x20] sm:$0xf]
        %v554 = vld [vmem:[%s544 + $0x24] sm:$0xf]
        %v555 = vld [vmem:[%s544 + $0x28] sm:$0xf]
        %v556 = vld [vmem:[%s544 + $0x2c] sm:$0xf]
        %v557 = vld [vmem:[%s544 + $0x30] sm:$0xf]
        %v558 = vld [vmem:[%s544 + $0x34] sm:$0xf]
        %v559 = vld [vmem:[%s544 + $0x38] sm:$0xf]
        %v560 = vld [vmem:[%s544 + $0x3c] sm:$0xf]
        %s561 = scalar_lea.vmem %s1, 16
        %v562 = vld [vmem:[%s561] sm:$0xf]
        %v563 = vld [vmem:[%s561 + $0x4] sm:$0x1]
        %v580 = vunpack.c.l.b16 %v545
        %v581 = vunpack.c.l.b16 %v546
        %v582 = vunpack.c.l.b16 %v547
        %v583 = vunpack.c.l.b16 %v548
        %v584 = vunpack.c.l.b16 %v549
        %v585 = vunpack.c.l.b16 %v550
        %v586 = vunpack.c.l.b16 %v551
        %v587 = vunpack.c.l.b16 %v552
        %v588 = vunpack.c.l.b16 %v553
        %v589 = vunpack.c.l.b16 %v554
        %v590 = vunpack.c.l.b16 %v555
        %v591 = vunpack.c.l.b16 %v556
        %v592 = vunpack.c.l.b16 %v557
        %v593 = vunpack.c.l.b16 %v558
        %v594 = vunpack.c.l.b16 %v559
        %v595 = vunpack.c.l.b16 %v560
        %v596 = vpack.c.b16 %v581, %v580
        %v597 = vpack.c.b16 %v583, %v582
        %v598 = vpack.c.b16 %v585, %v584
        %v599 = vpack.c.b16 %v587, %v586
        %v600 = vpack.c.b16 %v589, %v588
        %v601 = vpack.c.b16 %v591, %v590
        %v602 = vpack.c.b16 %v593, %v592
        %v603 = vpack.c.b16 %v595, %v594
        %v606 = vunpack.c.l.b16 %v562
        %v607 = vunpack.c.l.b16 %v563
        %v608 = vpack.c.b16 %v607, %v606
        %v610 = vsel %vm338, %v596, 0
        %v613 = vsel %vm338, %v597, 0
        %v616 = vsel %vm338, %v598, 0
        %v619 = vsel %vm338, %v599, 0
        %v622 = vsel %vm338, %v600, 0
        %v625 = vsel %vm338, %v601, 0
        %v628 = vsel %vm338, %v602, 0
        %v631 = vsel %vm338, %v603, 0
        %v634 = vand.u32 %v608, %v366
        %636 = vmatpush.bf16.msra.mxu0 0
        %637 = vmatpush.bf16.msra.mxu0 0
        %638 = vmatpush.bf16.msra.mxu0 0
        %639 = vmatpush.bf16.msra.mxu0 0
        %640 = vmatpush.bf16.msra.mxu0 0
        %641 = vmatpush.bf16.msra.mxu0 0
        %642 = vmatpush.bf16.msra.mxu0 0
        %643 = vmatpush.bf16.msra.mxu0 %v634
        %644 = vmatmul.bf16.gmra.mxu0 %v610
        %v645 = vpop.f32.mrf.mxu0
        %v646 = vadd.f32 0.0, %v645
        %v647 = vpop.f32.mrf.mxu0
        %v648 = vadd.f32 0.0, %v647
        %649 = vmatmul.bf16.gmra.mxu0 %v613
        %v650 = vpop.f32.mrf.mxu0
        %v651 = vadd.f32 0.0, %v650
        %v652 = vpop.f32.mrf.mxu0
        %v653 = vadd.f32 0.0, %v652
        %654 = vmatmul.bf16.gmra.mxu0 %v616
        %v655 = vpop.f32.mrf.mxu0
        %v656 = vadd.f32 0.0, %v655
        %v657 = vpop.f32.mrf.mxu0
        %v658 = vadd.f32 0.0, %v657
        %659 = vmatmul.bf16.gmra.mxu0 %v619
        %v660 = vpop.f32.mrf.mxu0
        %v661 = vadd.f32 0.0, %v660
        %v662 = vpop.f32.mrf.mxu0
        %v663 = vadd.f32 0.0, %v662
        %664 = vmatmul.bf16.gmra.mxu0 %v622
        %v665 = vpop.f32.mrf.mxu0
        %v666 = vadd.f32 0.0, %v665
        %v667 = vpop.f32.mrf.mxu0
        %v668 = vadd.f32 0.0, %v667
        %669 = vmatmul.bf16.gmra.mxu0 %v625
        %v670 = vpop.f32.mrf.mxu0
        %v671 = vadd.f32 0.0, %v670
        %v672 = vpop.f32.mrf.mxu0
        %v673 = vadd.f32 0.0, %v672
        %674 = vmatmul.bf16.gmra.mxu0 %v628
        %v675 = vpop.f32.mrf.mxu0
        %v676 = vadd.f32 0.0, %v675
        %v677 = vpop.f32.mrf.mxu0
        %v678 = vadd.f32 0.0, %v677
        %679 = vmatmul.bf16.gmra.mxu0 %v631
        %v680 = vpop.f32.mrf.mxu0
        %v681 = vadd.f32 0.0, %v680
        %v682 = vpop.f32.mrf.mxu0
        %v683 = vadd.f32 0.0, %v682
        %684 = vdwg.mxu0
        %v685 = vadd.f32 %v501, %v646
        %v686 = vadd.f32 %v503, %v648
        %v687 = vadd.f32 %v506, %v651
        %v688 = vadd.f32 %v508, %v653
        %v689 = vadd.f32 %v511, %v656
        %v690 = vadd.f32 %v513, %v658
        %v691 = vadd.f32 %v516, %v661
        %v692 = vadd.f32 %v518, %v663
        %v693 = vadd.f32 %v521, %v666
        %v694 = vadd.f32 %v523, %v668
        %v695 = vadd.f32 %v526, %v671
        %v696 = vadd.f32 %v528, %v673
        %v697 = vadd.f32 %v531, %v676
        %v698 = vadd.f32 %v533, %v678
        %v699 = vadd.f32 %v536, %v681
        %v700 = vadd.f32 %v538, %v683
        %v702 = vperm.slane %v250, 0
        %v704 = vadd.f32 %v685, %v702
        %v705 = vadd.f32 %v686, %v702
        %v706 = vadd.f32 %v687, %v702
        %v707 = vadd.f32 %v688, %v702
        %v708 = vadd.f32 %v689, %v702
        %v709 = vadd.f32 %v690, %v702
        %v710 = vadd.f32 %v691, %v702
        %v711 = vadd.f32 %v692, %v702
        %v712 = vadd.f32 %v693, %v702
        %v713 = vadd.f32 %v694, %v702
        %v714 = vadd.f32 %v695, %v702
        %v715 = vadd.f32 %v696, %v702
        %v716 = vadd.f32 %v697, %v702
        %v717 = vadd.f32 %v698, %v702
        %v718 = vadd.f32 %v699, %v702
        %v719 = vadd.f32 %v700, %v702
        %v720 = vmax.f32 %v704, 0.0
        %v721 = vmax.f32 %v705, 0.0
        %v722 = vmax.f32 %v706, 0.0
        %v723 = vmax.f32 %v707, 0.0
        %v724 = vmax.f32 %v708, 0.0
        %v725 = vmax.f32 %v709, 0.0
        %v726 = vmax.f32 %v710, 0.0
        %v727 = vmax.f32 %v711, 0.0
        %v728 = vmax.f32 %v712, 0.0
        %v729 = vmax.f32 %v713, 0.0
        %v730 = vmax.f32 %v714, 0.0
        %v731 = vmax.f32 %v715, 0.0
        %v732 = vmax.f32 %v716, 0.0
        %v733 = vmax.f32 %v717, 0.0
        %v734 = vmax.f32 %v718, 0.0
        %v735 = vmax.f32 %v719, 0.0
        %v736 = vld [vmem:[%s3] sm:$0x1]
        %s737 = scalar_lea.vmem %s248, 64
        %v738 = vld [vmem:[%s737] sm:$0xf]
        %v739 = vld [vmem:[%s737 + $0x4] sm:$0xf]
        %v740 = vld [vmem:[%s737 + $0x8] sm:$0xf]
        %v741 = vld [vmem:[%s737 + $0xc] sm:$0xf]
        %v742 = vld [vmem:[%s737 + $0x10] sm:$0xf]
        %v743 = vld [vmem:[%s737 + $0x14] sm:$0xf]
        %v744 = vld [vmem:[%s737 + $0x18] sm:$0xf]
        %v745 = vld [vmem:[%s737 + $0x1c] sm:$0xf]
        %v746 = vld [vmem:[%s737 + $0x20] sm:$0xf]
        %v747 = vld [vmem:[%s737 + $0x24] sm:$0xf]
        %v748 = vld [vmem:[%s737 + $0x28] sm:$0xf]
        %v749 = vld [vmem:[%s737 + $0x2c] sm:$0xf]
        %v750 = vld [vmem:[%s737 + $0x30] sm:$0xf]
        %v751 = vld [vmem:[%s737 + $0x34] sm:$0xf]
        %v752 = vld [vmem:[%s737 + $0x38] sm:$0xf]
        %v753 = vld [vmem:[%s737 + $0x3c] sm:$0xf]
        %s754 = sadd.s32 128, 16
        %s755 = sshra.s32 %s754, 3
        %s756 = sand.u32 %s754, 7
        %s757 = smul.addr %s755, 4
        %s758 = scalar_lea.vmem %s248, %s757
        %v759 = vld [vmem:[%s758] sm:$0xf]
        %v760 = vld [vmem:[%s758 + $0x4] sm:$0xf]
        %v761 = vld [vmem:[%s758 + $0x8] sm:$0xf]
        %v762 = vld [vmem:[%s758 + $0xc] sm:$0xf]
        %v763 = vld [vmem:[%s758 + $0x10] sm:$0xf]
        %v764 = vld [vmem:[%s758 + $0x14] sm:$0xf]
        %v765 = vld [vmem:[%s758 + $0x18] sm:$0xf]
        %v766 = vld [vmem:[%s758 + $0x1c] sm:$0xf]
        %v767 = vld [vmem:[%s758 + $0x20] sm:$0xf]
        %v768 = vld [vmem:[%s758 + $0x24] sm:$0xf]
        %v769 = vld [vmem:[%s758 + $0x28] sm:$0xf]
        %v770 = vld [vmem:[%s758 + $0x2c] sm:$0xf]
        %v771 = vld [vmem:[%s758 + $0x30] sm:$0xf]
        %v772 = vld [vmem:[%s758 + $0x34] sm:$0xf]
        %v773 = vld [vmem:[%s758 + $0x38] sm:$0xf]
        %v774 = vld [vmem:[%s758 + $0x3c] sm:$0xf]
        %v791 = vunpack.c.l.b16 %v759
        %v792 = vunpack.c.l.b16 %v760
        %v793 = vunpack.c.l.b16 %v761
        %v794 = vunpack.c.l.b16 %v762
        %v795 = vunpack.c.l.b16 %v763
        %v796 = vunpack.c.l.b16 %v764
        %v797 = vunpack.c.l.b16 %v765
        %v798 = vunpack.c.l.b16 %v766
        %v799 = vunpack.c.l.b16 %v767
        %v800 = vunpack.c.l.b16 %v768
        %v801 = vunpack.c.l.b16 %v769
        %v802 = vunpack.c.l.b16 %v770
        %v803 = vunpack.c.l.b16 %v771
        %v804 = vunpack.c.l.b16 %v772
        %v805 = vunpack.c.l.b16 %v773
        %v806 = vunpack.c.l.b16 %v774
        %v807 = vpack.c.b16 %v792, %v791
        %v808 = vpack.c.b16 %v794, %v793
        %v809 = vpack.c.b16 %v796, %v795
        %v810 = vpack.c.b16 %v798, %v797
        %v811 = vpack.c.b16 %v800, %v799
        %v812 = vpack.c.b16 %v802, %v801
        %v813 = vpack.c.b16 %v804, %v803
        %v814 = vpack.c.b16 %v806, %v805
        %v816 = vsel %vm338, %v807, 0
        %v819 = vsel %vm338, %v808, 0
        %v822 = vsel %vm338, %v809, 0
        %v825 = vsel %vm338, %v810, 0
        %v828 = vsel %vm338, %v811, 0
        %v831 = vsel %vm338, %v812, 0
        %v834 = vsel %vm338, %v813, 0
        %v837 = vsel %vm338, %v814, 0
        %839 = vmatpush.bf16.msra.mxu0 0
        %840 = vmatpush.bf16.msra.mxu0 0
        %841 = vmatpush.bf16.msra.mxu0 0
        %842 = vmatpush.bf16.msra.mxu0 0
        %843 = vmatpush.bf16.msra.mxu0 0
        %844 = vmatpush.bf16.msra.mxu0 0
        %845 = vmatpush.bf16.msra.mxu0 0
        %846 = vmatpush.bf16.msra.mxu0 %v368
        %847 = vmatmul.bf16.gmra.mxu0 %v816
        %v848 = vpop.f32.mrf.mxu0
        %v849 = vadd.f32 0.0, %v848
        %v850 = vpop.f32.mrf.mxu0
        %v851 = vadd.f32 0.0, %v850
        %852 = vmatmul.bf16.gmra.mxu0 %v819
        %v853 = vpop.f32.mrf.mxu0
        %v854 = vadd.f32 0.0, %v853
        %v855 = vpop.f32.mrf.mxu0
        %v856 = vadd.f32 0.0, %v855
        %857 = vmatmul.bf16.gmra.mxu0 %v822
        %v858 = vpop.f32.mrf.mxu0
        %v859 = vadd.f32 0.0, %v858
        %v860 = vpop.f32.mrf.mxu0
        %v861 = vadd.f32 0.0, %v860
        %862 = vmatmul.bf16.gmra.mxu0 %v825
        %v863 = vpop.f32.mrf.mxu0
        %v864 = vadd.f32 0.0, %v863
        %v865 = vpop.f32.mrf.mxu0
        %v866 = vadd.f32 0.0, %v865
        %867 = vmatmul.bf16.gmra.mxu0 %v828
        %v868 = vpop.f32.mrf.mxu0
        %v869 = vadd.f32 0.0, %v868
        %v870 = vpop.f32.mrf.mxu0
        %v871 = vadd.f32 0.0, %v870
        %872 = vmatmul.bf16.gmra.mxu0 %v831
        %v873 = vpop.f32.mrf.mxu0
        %v874 = vadd.f32 0.0, %v873
        %v875 = vpop.f32.mrf.mxu0
        %v876 = vadd.f32 0.0, %v875
        %877 = vmatmul.bf16.gmra.mxu0 %v834
        %v878 = vpop.f32.mrf.mxu0
        %v879 = vadd.f32 0.0, %v878
        %v880 = vpop.f32.mrf.mxu0
        %v881 = vadd.f32 0.0, %v880
        %882 = vmatmul.bf16.gmra.mxu0 %v837
        %v883 = vpop.f32.mrf.mxu0
        %v884 = vadd.f32 0.0, %v883
        %v885 = vpop.f32.mrf.mxu0
        %v886 = vadd.f32 0.0, %v885
        %887 = vdwg.mxu0
        %v904 = vunpack.c.l.b16 %v738
        %v905 = vunpack.c.l.b16 %v739
        %v906 = vunpack.c.l.b16 %v740
        %v907 = vunpack.c.l.b16 %v741
        %v908 = vunpack.c.l.b16 %v742
        %v909 = vunpack.c.l.b16 %v743
        %v910 = vunpack.c.l.b16 %v744
        %v911 = vunpack.c.l.b16 %v745
        %v912 = vunpack.c.l.b16 %v746
        %v913 = vunpack.c.l.b16 %v747
        %v914 = vunpack.c.l.b16 %v748
        %v915 = vunpack.c.l.b16 %v749
        %v916 = vunpack.c.l.b16 %v750
        %v917 = vunpack.c.l.b16 %v751
        %v918 = vunpack.c.l.b16 %v752
        %v919 = vunpack.c.l.b16 %v753
        %v920 = vpack.c.b16 %v905, %v904
        %v921 = vpack.c.b16 %v907, %v906
        %v922 = vpack.c.b16 %v909, %v908
        %v923 = vpack.c.b16 %v911, %v910
        %v924 = vpack.c.b16 %v913, %v912
        %v925 = vpack.c.b16 %v915, %v914
        %v926 = vpack.c.b16 %v917, %v916
        %v927 = vpack.c.b16 %v919, %v918
        %v929 = vsel %vm338, %v920, 0
        %v932 = vsel %vm338, %v921, 0
        %v935 = vsel %vm338, %v922, 0
        %v938 = vsel %vm338, %v923, 0
        %v941 = vsel %vm338, %v924, 0
        %v944 = vsel %vm338, %v925, 0
        %v947 = vsel %vm338, %v926, 0
        %v950 = vsel %vm338, %v927, 0
        %952 = vmatpush.bf16.msra.mxu0 0
        %953 = vmatpush.bf16.msra.mxu0 0
        %954 = vmatpush.bf16.msra.mxu0 0
        %955 = vmatpush.bf16.msra.mxu0 0
        %956 = vmatpush.bf16.msra.mxu0 0
        %957 = vmatpush.bf16.msra.mxu0 0
        %958 = vmatpush.bf16.msra.mxu0 0
        %959 = vmatpush.bf16.msra.mxu0 %v489
        %960 = vmatmul.bf16.gmra.mxu0 %v929
        %v961 = vpop.f32.mrf.mxu0
        %v962 = vadd.f32 %v849, %v961
        %v963 = vpop.f32.mrf.mxu0
        %v964 = vadd.f32 %v851, %v963
        %965 = vmatmul.bf16.gmra.mxu0 %v932
        %v966 = vpop.f32.mrf.mxu0
        %v967 = vadd.f32 %v854, %v966
        %v968 = vpop.f32.mrf.mxu0
        %v969 = vadd.f32 %v856, %v968
        %970 = vmatmul.bf16.gmra.mxu0 %v935
        %v971 = vpop.f32.mrf.mxu0
        %v972 = vadd.f32 %v859, %v971
        %v973 = vpop.f32.mrf.mxu0
        %v974 = vadd.f32 %v861, %v973
        %975 = vmatmul.bf16.gmra.mxu0 %v938
        %v976 = vpop.f32.mrf.mxu0
        %v977 = vadd.f32 %v864, %v976
        %v978 = vpop.f32.mrf.mxu0
        %v979 = vadd.f32 %v866, %v978
        %980 = vmatmul.bf16.gmra.mxu0 %v941
        %v981 = vpop.f32.mrf.mxu0
        %v982 = vadd.f32 %v869, %v981
        %v983 = vpop.f32.mrf.mxu0
        %v984 = vadd.f32 %v871, %v983
        %985 = vmatmul.bf16.gmra.mxu0 %v944
        %v986 = vpop.f32.mrf.mxu0
        %v987 = vadd.f32 %v874, %v986
        %v988 = vpop.f32.mrf.mxu0
        %v989 = vadd.f32 %v876, %v988
        %990 = vmatmul.bf16.gmra.mxu0 %v947
        %v991 = vpop.f32.mrf.mxu0
        %v992 = vadd.f32 %v879, %v991
        %v993 = vpop.f32.mrf.mxu0
        %v994 = vadd.f32 %v881, %v993
        %995 = vmatmul.bf16.gmra.mxu0 %v950
        %v996 = vpop.f32.mrf.mxu0
        %v997 = vadd.f32 %v884, %v996
        %v998 = vpop.f32.mrf.mxu0
        %v999 = vadd.f32 %v886, %v998
        %1000 = vdwg.mxu0
        %s1001 = sadd.s32 128, 32
        %s1002 = sshra.s32 %s1001, 3
        %s1003 = sand.u32 %s1001, 7
        %s1004 = smul.addr %s1002, 4
        %s1005 = scalar_lea.vmem %s248, %s1004
        %v1006 = vld [vmem:[%s1005] sm:$0xf]
        %v1007 = vld [vmem:[%s1005 + $0x4] sm:$0xf]
        %v1008 = vld [vmem:[%s1005 + $0x8] sm:$0xf]
        %v1009 = vld [vmem:[%s1005 + $0xc] sm:$0xf]
        %v1010 = vld [vmem:[%s1005 + $0x10] sm:$0xf]
        %v1011 = vld [vmem:[%s1005 + $0x14] sm:$0xf]
        %v1012 = vld [vmem:[%s1005 + $0x18] sm:$0xf]
        %v1013 = vld [vmem:[%s1005 + $0x1c] sm:$0xf]
        %v1014 = vld [vmem:[%s1005 + $0x20] sm:$0xf]
        %v1015 = vld [vmem:[%s1005 + $0x24] sm:$0xf]
        %v1016 = vld [vmem:[%s1005 + $0x28] sm:$0xf]
        %v1017 = vld [vmem:[%s1005 + $0x2c] sm:$0xf]
        %v1018 = vld [vmem:[%s1005 + $0x30] sm:$0xf]
        %v1019 = vld [vmem:[%s1005 + $0x34] sm:$0xf]
        %v1020 = vld [vmem:[%s1005 + $0x38] sm:$0xf]
        %v1021 = vld [vmem:[%s1005 + $0x3c] sm:$0xf]
        %v1038 = vunpack.c.l.b16 %v1006
        %v1039 = vunpack.c.l.b16 %v1007
        %v1040 = vunpack.c.l.b16 %v1008
        %v1041 = vunpack.c.l.b16 %v1009
        %v1042 = vunpack.c.l.b16 %v1010
        %v1043 = vunpack.c.l.b16 %v1011
        %v1044 = vunpack.c.l.b16 %v1012
        %v1045 = vunpack.c.l.b16 %v1013
        %v1046 = vunpack.c.l.b16 %v1014
        %v1047 = vunpack.c.l.b16 %v1015
        %v1048 = vunpack.c.l.b16 %v1016
        %v1049 = vunpack.c.l.b16 %v1017
        %v1050 = vunpack.c.l.b16 %v1018
        %v1051 = vunpack.c.l.b16 %v1019
        %v1052 = vunpack.c.l.b16 %v1020
        %v1053 = vunpack.c.l.b16 %v1021
        %v1054 = vpack.c.b16 %v1039, %v1038
        %v1055 = vpack.c.b16 %v1041, %v1040
        %v1056 = vpack.c.b16 %v1043, %v1042
        %v1057 = vpack.c.b16 %v1045, %v1044
        %v1058 = vpack.c.b16 %v1047, %v1046
        %v1059 = vpack.c.b16 %v1049, %v1048
        %v1060 = vpack.c.b16 %v1051, %v1050
        %v1061 = vpack.c.b16 %v1053, %v1052
        %v1063 = vsel %vm338, %v1054, 0
        %v1066 = vsel %vm338, %v1055, 0
        %v1069 = vsel %vm338, %v1056, 0
        %v1072 = vsel %vm338, %v1057, 0
        %v1075 = vsel %vm338, %v1058, 0
        %v1078 = vsel %vm338, %v1059, 0
        %v1081 = vsel %vm338, %v1060, 0
        %v1084 = vsel %vm338, %v1061, 0
        %1086 = vmatpush.bf16.msra.mxu0 0
        %1087 = vmatpush.bf16.msra.mxu0 0
        %1088 = vmatpush.bf16.msra.mxu0 0
        %1089 = vmatpush.bf16.msra.mxu0 0
        %1090 = vmatpush.bf16.msra.mxu0 0
        %1091 = vmatpush.bf16.msra.mxu0 0
        %1092 = vmatpush.bf16.msra.mxu0 0
        %1093 = vmatpush.bf16.msra.mxu0 %v634
        %1094 = vmatmul.bf16.gmra.mxu0 %v1063
        %v1095 = vpop.f32.mrf.mxu0
        %v1096 = vadd.f32 0.0, %v1095
        %v1097 = vpop.f32.mrf.mxu0
        %v1098 = vadd.f32 0.0, %v1097
        %1099 = vmatmul.bf16.gmra.mxu0 %v1066
        %v1100 = vpop.f32.mrf.mxu0
        %v1101 = vadd.f32 0.0, %v1100
        %v1102 = vpop.f32.mrf.mxu0
        %v1103 = vadd.f32 0.0, %v1102
        %1104 = vmatmul.bf16.gmra.mxu0 %v1069
        %v1105 = vpop.f32.mrf.mxu0
        %v1106 = vadd.f32 0.0, %v1105
        %v1107 = vpop.f32.mrf.mxu0
        %v1108 = vadd.f32 0.0, %v1107
        %1109 = vmatmul.bf16.gmra.mxu0 %v1072
        %v1110 = vpop.f32.mrf.mxu0
        %v1111 = vadd.f32 0.0, %v1110
        %v1112 = vpop.f32.mrf.mxu0
        %v1113 = vadd.f32 0.0, %v1112
        %1114 = vmatmul.bf16.gmra.mxu0 %v1075
        %v1115 = vpop.f32.mrf.mxu0
        %v1116 = vadd.f32 0.0, %v1115
        %v1117 = vpop.f32.mrf.mxu0
        %v1118 = vadd.f32 0.0, %v1117
        %1119 = vmatmul.bf16.gmra.mxu0 %v1078
        %v1120 = vpop.f32.mrf.mxu0
        %v1121 = vadd.f32 0.0, %v1120
        %v1122 = vpop.f32.mrf.mxu0
        %v1123 = vadd.f32 0.0, %v1122
        %1124 = vmatmul.bf16.gmra.mxu0 %v1081
        %v1125 = vpop.f32.mrf.mxu0
        %v1126 = vadd.f32 0.0, %v1125
        %v1127 = vpop.f32.mrf.mxu0
        %v1128 = vadd.f32 0.0, %v1127
        %1129 = vmatmul.bf16.gmra.mxu0 %v1084
        %v1130 = vpop.f32.mrf.mxu0
        %v1131 = vadd.f32 0.0, %v1130
        %v1132 = vpop.f32.mrf.mxu0
        %v1133 = vadd.f32 0.0, %v1132
        %1134 = vdwg.mxu0
        %v1135 = vadd.f32 %v962, %v1096
        %v1136 = vadd.f32 %v964, %v1098
        %v1137 = vadd.f32 %v967, %v1101
        %v1138 = vadd.f32 %v969, %v1103
        %v1139 = vadd.f32 %v972, %v1106
        %v1140 = vadd.f32 %v974, %v1108
        %v1141 = vadd.f32 %v977, %v1111
        %v1142 = vadd.f32 %v979, %v1113
        %v1143 = vadd.f32 %v982, %v1116
        %v1144 = vadd.f32 %v984, %v1118
        %v1145 = vadd.f32 %v987, %v1121
        %v1146 = vadd.f32 %v989, %v1123
        %v1147 = vadd.f32 %v992, %v1126
        %v1148 = vadd.f32 %v994, %v1128
        %v1149 = vadd.f32 %v997, %v1131
        %v1150 = vadd.f32 %v999, %v1133
        %v1151 = vadd.f32 %v1135, %v702
        %v1152 = vadd.f32 %v1136, %v702
        %v1153 = vadd.f32 %v1137, %v702
        %v1154 = vadd.f32 %v1138, %v702
        %v1155 = vadd.f32 %v1139, %v702
        %v1156 = vadd.f32 %v1140, %v702
        %v1157 = vadd.f32 %v1141, %v702
        %v1158 = vadd.f32 %v1142, %v702
        %v1159 = vadd.f32 %v1143, %v702
        %v1160 = vadd.f32 %v1144, %v702
        %v1161 = vadd.f32 %v1145, %v702
        %v1162 = vadd.f32 %v1146, %v702
        %v1163 = vadd.f32 %v1147, %v702
        %v1164 = vadd.f32 %v1148, %v702
        %v1165 = vadd.f32 %v1149, %v702
        %v1166 = vadd.f32 %v1150, %v702
        %v1167 = vmax.f32 %v1151, 0.0
        %v1168 = vmax.f32 %v1152, 0.0
        %v1169 = vmax.f32 %v1153, 0.0
        %v1170 = vmax.f32 %v1154, 0.0
        %v1171 = vmax.f32 %v1155, 0.0
        %v1172 = vmax.f32 %v1156, 0.0
        %v1173 = vmax.f32 %v1157, 0.0
        %v1174 = vmax.f32 %v1158, 0.0
        %v1175 = vmax.f32 %v1159, 0.0
        %v1176 = vmax.f32 %v1160, 0.0
        %v1177 = vmax.f32 %v1161, 0.0
        %v1178 = vmax.f32 %v1162, 0.0
        %v1179 = vmax.f32 %v1163, 0.0
        %v1180 = vmax.f32 %v1164, 0.0
        %v1181 = vmax.f32 %v1165, 0.0
        %v1182 = vmax.f32 %v1166, 0.0
        %s1183 = scalar_lea.vmem %s3, 1
        %v1184 = vld [vmem:[%s1183] sm:$0x1]
        %1185 = vmatpush.msra.mxu0 %v1182
        %1186 = vmatpush.msra.mxu0 %v1181
        %1187 = vmatpush.msra.mxu0 %v1180
        %1188 = vmatpush.msra.mxu0 %v1179
        %1189 = vmatpush.msra.mxu0 %v1178
        %1190 = vmatpush.msra.mxu0 %v1177
        %1191 = vmatpush.msra.mxu0 %v1176
        %1192 = vmatpush.msra.mxu0 %v1175
        %1193 = vmatpush.msra.mxu0 %v1174
        %1194 = vmatpush.msra.mxu0 %v1173
        %1195 = vmatpush.msra.mxu0 %v1172
        %1196 = vmatpush.msra.mxu0 %v1171
        %1197 = vmatpush.msra.mxu0 %v1170
        %1198 = vmatpush.msra.mxu0 %v1169
        %1199 = vmatpush.msra.mxu0 %v1168
        %1200 = vmatpush.msra.mxu0 %v1167
        %1201 = vmatmul.f32.gmra.mxu0 %v1184
        %v1202 = vpop.f32.mrf.mxu0
        %v1203 = vadd.f32 0.0, %v1202
        %1204 = vdwg.mxu0
        %1205 = vmatpush.msra.mxu0 %v735
        %1206 = vmatpush.msra.mxu0 %v734
        %1207 = vmatpush.msra.mxu0 %v733
        %1208 = vmatpush.msra.mxu0 %v732
        %1209 = vmatpush.msra.mxu0 %v731
        %1210 = vmatpush.msra.mxu0 %v730
        %1211 = vmatpush.msra.mxu0 %v729
        %1212 = vmatpush.msra.mxu0 %v728
        %1213 = vmatpush.msra.mxu0 %v727
        %1214 = vmatpush.msra.mxu0 %v726
        %1215 = vmatpush.msra.mxu0 %v725
        %1216 = vmatpush.msra.mxu0 %v724
        %1217 = vmatpush.msra.mxu0 %v723
        %1218 = vmatpush.msra.mxu0 %v722
        %1219 = vmatpush.msra.mxu0 %v721
        %1220 = vmatpush.msra.mxu0 %v720
        %1221 = vmatmul.f32.gmra.mxu0 %v736
        %v1222 = vpop.f32.mrf.mxu0
        %v1223 = vadd.f32 %v1203, %v1222
        %1224 = vdwg.mxu0
        %v1225 = vld [vmem:[%s4] sm:$0xff]
        %v1226 = vld [vmem:[%s4 + $0x8] sm:$0xff]
        %v1227 = vld [vmem:[%s4 + $0x10] sm:$0xff]
        %v1228 = vld [vmem:[%s4 + $0x18] sm:$0xff]
        %v1229 = vld [vmem:[%s4 + $0x20] sm:$0xff]
        %v1230 = vld [vmem:[%s4 + $0x28] sm:$0xff]
        %v1231 = vld [vmem:[%s4 + $0x30] sm:$0xff]
        %v1232 = vld [vmem:[%s4 + $0x38] sm:$0xff]
        %v1233 = vld [vmem:[%s4 + $0x40] sm:$0xff]
        %v1234 = vld [vmem:[%s4 + $0x48] sm:$0xff]
        %v1235 = vld [vmem:[%s4 + $0x50] sm:$0xff]
        %v1236 = vld [vmem:[%s4 + $0x58] sm:$0xff]
        %v1237 = vld [vmem:[%s4 + $0x60] sm:$0xff]
        %v1238 = vld [vmem:[%s4 + $0x68] sm:$0xff]
        %v1239 = vld [vmem:[%s4 + $0x70] sm:$0xff]
        %v1240 = vld [vmem:[%s4 + $0x78] sm:$0xff]
        %v1241 = vld [vmem:[%s5] sm:$0x1]
        %1242 = vmatpush.msra.mxu0 %v1240
        %1243 = vmatpush.msra.mxu0 %v1239
        %1244 = vmatpush.msra.mxu0 %v1238
        %1245 = vmatpush.msra.mxu0 %v1237
        %1246 = vmatpush.msra.mxu0 %v1236
        %1247 = vmatpush.msra.mxu0 %v1235
        %1248 = vmatpush.msra.mxu0 %v1234
        %1249 = vmatpush.msra.mxu0 %v1233
        %1250 = vmatpush.msra.mxu0 %v1232
        %1251 = vmatpush.msra.mxu0 %v1231
        %1252 = vmatpush.msra.mxu0 %v1230
        %1253 = vmatpush.msra.mxu0 %v1229
        %1254 = vmatpush.msra.mxu0 %v1228
        %1255 = vmatpush.msra.mxu0 %v1227
        %1256 = vmatpush.msra.mxu0 %v1226
        %1257 = vmatpush.msra.mxu0 %v1225
        %1258 = vmatmul.f32.gmra.mxu0 %v1223
        %v1259 = vpop.f32.mrf.mxu0
        %v1260 = vadd.f32 %v1241, %v1259
        %1261 = vdwg.mxu0
        %1262 = vst [vmem:[%s243] sm:$0x1] %v1260
        %s1263 = sand.u32 %s159, 1
        %s1264 = scalar_lea.sflag [#allocation3], %s1263
        %s1265 = sand.u32 %s159, 1
        %s1266 = scalar_lea.vmem [#allocation2], %s1265
        // Predicated region
        $region45: #{tpu_custom_call.1} parent=43 // pred_check
          %p1267 = pneg %p169
        $region46: #{tpu_custom_call.1} parent=43 // pred_check_branch
          %1269 = sbr.rel (%p1267) target = $region48
        $region47: #{tpu_custom_call.1} parent=43 // pred_region
          %1271 = vsyncadd %s1264, 0
          %s1272 = scalar_lea.hbm %s6, %s20
          %s1274 = sshll.u32 %s1266, 4
          %s1275 = int_to_ptr.vmem [resolvable:$true] %s1274
          %s1276 = sshll.u32 %s1272, 4
          %s1277 = int_to_ptr.hbm [resolvable:$true] %s1276
          %1279 = dma.vmem_to_hbm [thread:$0]  %s1275, 16, %s1277, %s1264
        $region48: #{tpu_custom_call.1} parent=43 // pred_fallthru
          _
      $region44: #{tpu_custom_call.1} parent=5 // pred_fallthru
        _
      %p1280 = scmp.le.s32.totalorder 2, %s15
      // Predicated region
      $region49: #{tpu_custom_call.1} parent=5 // pred_check
        %p1281 = pneg %p1280
      $region50: #{tpu_custom_call.1} parent=5 // pred_check_branch
        %1283 = sbr.rel (%p1281) target = $region52
      $region51: #{tpu_custom_call.1} parent=5 // pred_region
        %s1284 = ssub.s32 %s15, 2
        // Predicated region
        $region53: #{tpu_custom_call.1} parent=51 // pred_check
          %p1285 = pneg %p175
        $region54: #{tpu_custom_call.1} parent=51 // pred_check_branch
          %1287 = sbr.rel (%p1285) target = $region56
        $region55: #{tpu_custom_call.1} parent=51 // pred_region
          %s1288 = sand.u32 %s160, 1
          %s1289 = scalar_lea.sflag [#allocation3], %s1288
          %s1290 = sand.u32 %s160, 1
          %s1291 = scalar_lea.vmem [#allocation2], %s1290
          %1293 = dma.done %s1289, 16
        $region56: #{tpu_custom_call.1} parent=51 // pred_fallthru
          _
      $region52: #{tpu_custom_call.1} parent=5 // pred_fallthru
        _
    $region6: #{tpu_custom_call.1} parent=1 // loop_footer
      %s19 = sadd.s32 1, %s15
    $region7: #{tpu_custom_call.1} parent=1 // loop_footer_branch
      %14 = sbr.rel target = $region3
    $region8: #{tpu_custom_call.1} parent=1 // loop_exit
      _
    %1294 = vsyncpa [#allocation3], 1
    %s1295 = scalar_lea.sflag [#allocation3], 1
    %1296 = vsyncpa %s1295, 1

</llo_original>
